<compile_context>
chip_gen: v7x
topology: tpu7x:2x2x1
jax: 0.10.0
libtpu: 0.0.40
codegen_flags: <defaults>
</compile_context>

<pallas_src>
import functools

import jax
import jax.numpy as jnp
from jax.experimental import pallas as pl
from jax.experimental.pallas import tpu as pltpu

NEG_SLOPE = 0.01     # nn.LeakyReLU default
BN_EPS = 1e-5        # nn.BatchNorm1d default
LANES = 128


def _leaky(x):
    return jnp.where(x > 0, x, NEG_SLOPE * x)


def _round8(n):
    return -(-n // 8) * 8


def _pad_block(arr, rows):
    r, c = arr.shape
    return jnp.pad(arr.astype(jnp.float32), ((0, rows - r), (0, LANES - c)))


# --------------------------------- kernel ---------------------------------
def rgcn_kernel(data_ref, p_ref, out_ref, *, N, D, G, HID, L, off, vrows):
    A = data_ref[0:N, 0:N]                       # [N, N] GCN-normalized adjacency
    H = data_ref[N:2 * N, 0:D]                   # [N, D] node features
    M = data_ref[2 * N:2 * N + 2 * G, 0:N]       # [2G, N] mean-pool (post rows, then image rows)

    vecs = p_ref[off["vec"]:off["vec"] + vrows, :]   # [vrows, 128] all bias rows (one lane-dense load)

    # --- stacked GCNConv layers: H <- leaky_relu(A_norm @ H @ W_l + b_l) ---
    for l in range(L):
        W = p_ref[off["wg"] + l * D: off["wg"] + (l + 1) * D, 0:D]
        b = vecs[l:l + 1, 0:D]
        if N <= D:   # statically pick the cheaper contraction order
            H = jnp.dot(jnp.dot(A, H, preferred_element_type=jnp.float32), W,
                        preferred_element_type=jnp.float32) + b
        else:
            H = jnp.dot(A, jnp.dot(H, W, preferred_element_type=jnp.float32),
                        preferred_element_type=jnp.float32) + b
        H = _leaky(H)

    # --- both mean-pools in one matmul (Hbn affine is folded into gw1/gb1) ---
    pool = jnp.dot(M, H, preferred_element_type=jnp.float32)   # [2G, D]
    p = pool[0:G]            # post features
    q = pool[G:2 * G]        # image features

    # --- generate_feature layer 1, concat-free:
    #     h = p@Ga + q@Gb + (p-q)@Gc + (p*q)@Gd + gb1'   (Hbn folded in) ---
    g0 = off["gw1"]
    h = (jnp.dot(p, p_ref[g0 + 0 * D:g0 + 1 * D, 0:D], preferred_element_type=jnp.float32)
         + jnp.dot(q, p_ref[g0 + 1 * D:g0 + 2 * D, 0:D], preferred_element_type=jnp.float32)
         + jnp.dot(p - q, p_ref[g0 + 2 * D:g0 + 3 * D, 0:D], preferred_element_type=jnp.float32)
         + jnp.dot(p * q, p_ref[g0 + 3 * D:g0 + 4 * D, 0:D], preferred_element_type=jnp.float32)
         + vecs[L:L + 1, 0:D])
    h = _leaky(h)            # Dropout(p=0.1) is identity in eval mode

    # --- generate_feature layer 2 (bn2 folded into gw2/gb2) ---
    feat = (jnp.dot(h, p_ref[off["gw2"]:off["gw2"] + D, 0:D],
                    preferred_element_type=jnp.float32)
            + vecs[L + 1:L + 2, 0:D])

    # --- feature_layer fc1 + LeakyReLU ---
    hid = _leaky(jnp.dot(feat, p_ref[off["fw1"]:off["fw1"] + D, 0:HID],
                         preferred_element_type=jnp.float32)
                 + vecs[L + 2:L + 3, 0:HID])

    # --- feature_layer fc2 + output head fused into one lane-dense [G, 128] store:
    #     lanes [0:FOUT) = out, lanes [FOUT:FOUT+2) = prob logits, rest zero ---
    out_ref[...] = (jnp.dot(hid, p_ref[off["fw2"]:off["fw2"] + HID, :],
                            preferred_element_type=jnp.float32)
                    + vecs[L + 3:L + 4, :])


# ------------------------------ wrapper glue -------------------------------
def pack_params(params, *, D, HID, FOUT, L):
    """Fold eval-mode BNs + output head into the linears and pack everything
    into one lane-dense [R, 128] f32 slab.  Returns (slab, row_offsets, vrows)."""
    # Hbn eval affine:  y = x * s + t
    s = (params["hbn_g"] / jnp.sqrt(params["hbn_rv"] + BN_EPS))[0]             # [D]
    t = (params["hbn_b"] - params["hbn_rm"] * params["hbn_g"]
         / jnp.sqrt(params["hbn_rv"] + BN_EPS))[0]                             # [D]

    gw1 = params["gw1"]
    A1, B1, C1, D1 = gw1[0:D], gw1[D:2 * D], gw1[2 * D:3 * D], gw1[3 * D:4 * D]
    # Push Hbn through the mean pools (pool rows sum to 1): p' = p*s + t, q' = q*s + t
    # then fold into the four gw1 row blocks and bias.
    Ga = s[:, None] * A1 + (s * t)[:, None] * D1
    Gb = s[:, None] * B1 + (s * t)[:, None] * D1
    Gc = s[:, None] * C1
    Gd = (s * s)[:, None] * D1
    gb1_f = (params["gb1"] + t[None, :] @ A1 + t[None, :] @ B1
             + (t * t)[None, :] @ D1)

    # bn2 eval affine folded into gw2 (column scale) / gb2.
    s2 = params["bn2_g"] / jnp.sqrt(params["bn2_rv"] + BN_EPS)                 # [1, D]
    t2 = params["bn2_b"] - params["bn2_rm"] * s2
    gw2_f = params["gw2"] * s2
    gb2_f = params["gb2"] * s2 + t2

    # Output head folded into fc2:  [out | prob] = hid @ [fw2 | fw2@ow] + [fb2 | fb2@ow + ob]
    fw2_ext = jnp.concatenate([params["fw2"], params["fw2"] @ params["ow"]], axis=1)
    fb2_ext = jnp.concatenate([params["fb2"], params["fb2"] @ params["ow"] + params["ob"]],
                              axis=1)

    vrows = _round8(L + 4)
    vec = jnp.zeros((vrows, LANES), jnp.float32)
    for l in range(L):
        vec = vec.at[l, :D].set(params["bg"][l, 0])
    vec = vec.at[L, :D].set(gb1_f[0])
    vec = vec.at[L + 1, :D].set(gb2_f[0])
    vec = vec.at[L + 2, :HID].set(params["fb1"][0])
    vec = vec.at[L + 3, :FOUT + 2].set(fb2_ext[0])

    entries = [
        ("wg", params["wg"].reshape(L * D, D)),
        ("gw1", jnp.concatenate([Ga, Gb, Gc, Gd], axis=0)),
        ("gw2", gw2_f),
        ("fw1", params["fw1"]),
        ("fw2", fw2_ext),
        ("vec", vec),
    ]
    parts, off, cur = [], {}, 0
    for name, arr in entries:
        rows = _round8(arr.shape[0])
        off[name] = cur
        parts.append(_pad_block(arr, rows))
        cur += rows
    return jnp.concatenate(parts, axis=0), off, vrows


def pack_data(a_norm, x, m_post, m_img, *, N, D, G):
    rows = 2 * N + _round8(2 * G)
    slab = jnp.zeros((rows, LANES), jnp.float32)
    slab = slab.at[0:N, 0:N].set(a_norm)
    slab = slab.at[N:2 * N, 0:D].set(x)
    slab = slab.at[2 * N:2 * N + G, 0:N].set(m_post)
    slab = slab.at[2 * N + G:2 * N + 2 * G, 0:N].set(m_img)
    return slab


def multimodal_rgcn_forward(a_norm, x, params, m_post, m_img, *, num_layers, feature_out):
    N, D = x.shape
    G = m_post.shape[0]
    HID = params["fw1"].shape[1]

    data_slab = pack_data(a_norm, x, m_post, m_img, N=N, D=D, G=G)
    param_slab, off, vrows = pack_params(params, D=D, HID=HID, FOUT=feature_out, L=num_layers)

    vmem = pl.BlockSpec(memory_space=pltpu.MemorySpace.VMEM)
    out_slab = pl.pallas_call(
        functools.partial(rgcn_kernel, N=N, D=D, G=G, HID=HID, L=num_layers,
                          off=off, vrows=vrows),
        out_shape=jax.ShapeDtypeStruct((G, LANES), jnp.float32),
        in_specs=[vmem, vmem],
        out_specs=vmem,
    )(data_slab, param_slab)
    # TODO(synk): for large N, tile A_norm over a grid (BlockSpec((tm, N))) with
    # dimension_semantics=("parallel",) so v7x's 64 MiB VMEM / second TensorCore are used.
    return out_slab[:, :feature_out], out_slab[:, feature_out:feature_out + 2]


# ------------------- pure-JAX reference (original, unfused math) -------------------
def reference_forward(a_norm, x, params, m_post, m_img, *, num_layers):
    H = x
    for l in range(num_layers):
        H = a_norm @ (H @ params["wg"][l]) + params["bg"][l]
        H = _leaky(H)
    H = ((H - params["hbn_rm"]) * params["hbn_g"]
         / jnp.sqrt(params["hbn_rv"] + BN_EPS) + params["hbn_b"])
    post = m_post @ H
    img = m_img @ H
    comb = jnp.concatenate([post, img, post - img, post * img], axis=-1)
    h = _leaky(comb @ params["gw1"] + params["gb1"])
    feat = h @ params["gw2"] + params["gb2"]
    feat = ((feat - params["bn2_rm"]) * params["bn2_g"]
            / jnp.sqrt(params["bn2_rv"] + BN_EPS) + params["bn2_b"])
    o = _leaky(feat @ params["fw1"] + params["fb1"])
    o = o @ params["fw2"] + params["fb2"]
    prob = o @ params["ow"] + params["ob"]
    return o, prob


if __name__ == "__main__":
    # ---- problem sizes (small, consistent with the module's forward) ----
    N = 16          # number of graph nodes
    D = 32          # args.dim_node_features
    L = 2           # args.num_gnn_layers
    G = 2           # batch.num_graphs
    HID = 64        # encodeMLP hidden
    FOUT = 32       # feature_out
    E = 40          # number of edges

    key = jax.random.PRNGKey(0)
    keys = jax.random.split(key, 24)

    # ---- synthetic batched graph (PyG-style) ----
    src = jax.random.randint(keys[0], (E,), 0, N)
    dst = jax.random.randint(keys[1], (E,), 0, N)
    x = jax.random.normal(keys[2], (N, D), jnp.float32)
    batch_vec = jnp.repeat(jnp.arange(G), N // G)
    post_idx = jnp.array([0, 2, 4, 8, 10], jnp.int32)
    image_idx = jnp.array([1, 3, 9, 11, 13], jnp.int32)

    # ---- glue: dense GCN-normalized adjacency (add_self_loops=True, normalize=True) ----
    A = jnp.zeros((N, N), jnp.float32).at[dst, src].add(1.0)
    A_hat = A + jnp.eye(N, dtype=jnp.float32)
    deg = A_hat.sum(axis=1)
    dinv = 1.0 / jnp.sqrt(deg)
    a_norm = dinv[:, None] * A_hat * dinv[None, :]

    # ---- glue: global_mean_pool as pooling matrices [G, N] ----
    def pool_matrix(idx):
        m = jnp.zeros((G, N), jnp.float32).at[batch_vec[idx], idx].add(1.0)
        cnt = m.sum(axis=1, keepdims=True)
        return m / jnp.maximum(cnt, 1.0)

    m_post = pool_matrix(post_idx)
    m_img = pool_matrix(image_idx)

    # ---- deterministic parameter init (shapes mirror the PyTorch module) ----
    def w(k, shape, scale=0.1):
        return (scale * jax.random.normal(k, shape)).astype(jnp.float32)

    params = {
        "wg": w(keys[3], (L, D, D)),                 # GCNConv weights (in -> out)
        "bg": w(keys[4], (L, 1, D)),                 # GCNConv biases
        "hbn_g": 1.0 + w(keys[5], (1, D)),           # Hbn gamma
        "hbn_b": w(keys[6], (1, D)),                 # Hbn beta
        "hbn_rm": w(keys[16], (1, D)),               # Hbn running mean
        "hbn_rv": 1.0 + 0.1 * jax.random.uniform(keys[17], (1, D)),   # running var
        "gw1": w(keys[7], (4 * D, D)),               # generate_feature Linear(4D -> D)
        "gb1": w(keys[8], (1, D)),
        "gw2": w(keys[9], (D, D)),                   # generate_feature Linear(D -> D)
        "gb2": w(keys[10], (1, D)),
        "bn2_g": 1.0 + w(keys[11], (1, D)),          # bn2 gamma
        "bn2_b": w(keys[12], (1, D)),                # bn2 beta
        "bn2_rm": w(keys[18], (1, D)),               # bn2 running mean
        "bn2_rv": 1.0 + 0.1 * jax.random.uniform(keys[19], (1, D)),   # running var
        "fw1": w(keys[13], (D, HID)),                # encodeMLP fc1
        "fb1": w(keys[20], (1, HID)),
        "fw2": w(keys[14], (HID, FOUT)),             # encodeMLP fc2
        "fb2": w(keys[21], (1, FOUT)),
        "ow": w(keys[15], (FOUT, 2)),                # output Linear(feature_out -> 2)
        "ob": w(keys[22], (1, 2)),
    }

    out, prob = multimodal_rgcn_forward(
        a_norm, x, params, m_post, m_img, num_layers=L, feature_out=FOUT)
    jax.block_until_ready((out, prob))

    # verify against a pure-JAX reference of the original (unfused) eval-mode math
    out_ref, prob_ref = reference_forward(a_norm, x, params, m_post, m_img, num_layers=L)
    assert out.shape == (G, FOUT) and prob.shape == (G, 2)
    assert jnp.allclose(out, out_ref, rtol=1e-4, atol=1e-4)
    assert jnp.allclose(prob, prob_ref, rtol=1e-4, atol=1e-4)

    print("KERNEL_OK")
</pallas_src>

<mosaic_0001>
module attributes {stable_mosaic.version = 11 : i64} {
  func.func @rgcn_kernel(%arg0: memref<40x128xf32, #tpu.memory_space<vmem>>, %arg1: memref<328x128xf32, #tpu.memory_space<vmem>>, %arg2: memref<2x128xf32, #tpu.memory_space<vmem>>) attributes {dimension_semantics = [], scalar_prefetch = 0 : i64, scratch_operands = 0 : i64, tpu.core_type = #tpu.core_type<tc>} {
    %c0 = arith.constant 0 : index
    %c0_0 = arith.constant 0 : index
    %0 = vector.load %arg0[%c0, %c0_0] : memref<40x128xf32, #tpu.memory_space<vmem>>, vector<16x16xf32>
    %c16 = arith.constant 16 : index
    %c0_1 = arith.constant 0 : index
    %1 = vector.load %arg0[%c16, %c0_1] : memref<40x128xf32, #tpu.memory_space<vmem>>, vector<16x32xf32>
    %c32 = arith.constant 32 : index
    %c0_2 = arith.constant 0 : index
    %2 = vector.load %arg0[%c32, %c0_2] : memref<40x128xf32, #tpu.memory_space<vmem>>, vector<4x16xf32>
    %c320 = arith.constant 320 : index
    %c0_3 = arith.constant 0 : index
    %3 = vector.load %arg1[%c320, %c0_3] : memref<328x128xf32, #tpu.memory_space<vmem>>, vector<8x128xf32>
    %c0_4 = arith.constant 0 : index
    %c0_5 = arith.constant 0 : index
    %4 = vector.load %arg1[%c0_4, %c0_5] : memref<328x128xf32, #tpu.memory_space<vmem>>, vector<32x32xf32>
    %5 = vector.extract_strided_slice %3 {offsets = [0, 0], sizes = [1, 32], strides = [1, 1]} : vector<8x128xf32> to vector<1x32xf32>
    %cst = arith.constant dense<0.000000e+00> : vector<16x32xf32>
    %6 = tpu.matmul %0, %1, %cst {dimension_numbers = #tpu.dot_dimension_numbers<[1], [0], [0], [1], [0, 0, 1, 1], [], []>} : vector<16x16xf32>, vector<16x32xf32>, vector<16x32xf32> -> vector<16x32xf32>
    %cst_6 = arith.constant dense<0.000000e+00> : vector<16x32xf32>
    %7 = tpu.matmul %6, %4, %cst_6 {dimension_numbers = #tpu.dot_dimension_numbers<[1], [0], [0], [1], [0, 0, 1, 1], [], []>} : vector<16x32xf32>, vector<32x32xf32>, vector<16x32xf32> -> vector<16x32xf32>
    %8 = vector.broadcast %5 : vector<1x32xf32> to vector<16x32xf32>
    %9 = arith.addf %7, %8 : vector<16x32xf32>
    %cst_7 = arith.constant 0.000000e+00 : f32
    %10 = vector.broadcast %cst_7 : f32 to vector<16x32xf32>
    %11 = arith.cmpf ogt, %9, %10 : vector<16x32xf32>
    %cst_8 = arith.constant 0.00999999977 : f32
    %12 = vector.broadcast %cst_8 : f32 to vector<16x32xf32>
    %13 = arith.mulf %12, %9 : vector<16x32xf32>
    %14 = arith.select %11, %9, %13 : vector<16x32xi1>, vector<16x32xf32>
    %c32_9 = arith.constant 32 : index
    %c0_10 = arith.constant 0 : index
    %15 = vector.load %arg1[%c32_9, %c0_10] : memref<328x128xf32, #tpu.memory_space<vmem>>, vector<32x32xf32>
    %16 = vector.extract_strided_slice %3 {offsets = [1, 0], sizes = [1, 32], strides = [1, 1]} : vector<8x128xf32> to vector<1x32xf32>
    %cst_11 = arith.constant dense<0.000000e+00> : vector<16x32xf32>
    %17 = tpu.matmul %0, %14, %cst_11 {dimension_numbers = #tpu.dot_dimension_numbers<[1], [0], [0], [1], [0, 0, 1, 1], [], []>} : vector<16x16xf32>, vector<16x32xf32>, vector<16x32xf32> -> vector<16x32xf32>
    %cst_12 = arith.constant dense<0.000000e+00> : vector<16x32xf32>
    %18 = tpu.matmul %17, %15, %cst_12 {dimension_numbers = #tpu.dot_dimension_numbers<[1], [0], [0], [1], [0, 0, 1, 1], [], []>} : vector<16x32xf32>, vector<32x32xf32>, vector<16x32xf32> -> vector<16x32xf32>
    %19 = vector.broadcast %16 : vector<1x32xf32> to vector<16x32xf32>
    %20 = arith.addf %18, %19 : vector<16x32xf32>
    %cst_13 = arith.constant 0.000000e+00 : f32
    %21 = vector.broadcast %cst_13 : f32 to vector<16x32xf32>
    %22 = arith.cmpf ogt, %20, %21 : vector<16x32xf32>
    %cst_14 = arith.constant 0.00999999977 : f32
    %23 = vector.broadcast %cst_14 : f32 to vector<16x32xf32>
    %24 = arith.mulf %23, %20 : vector<16x32xf32>
    %25 = arith.select %22, %20, %24 : vector<16x32xi1>, vector<16x32xf32>
    %cst_15 = arith.constant dense<0.000000e+00> : vector<4x32xf32>
    %26 = tpu.matmul %2, %25, %cst_15 {dimension_numbers = #tpu.dot_dimension_numbers<[1], [0], [0], [1], [0, 0, 1, 1], [], []>} : vector<4x16xf32>, vector<16x32xf32>, vector<4x32xf32> -> vector<4x32xf32>
    %27 = vector.extract_strided_slice %26 {offsets = [0, 0], sizes = [2, 32], strides = [1, 1]} : vector<4x32xf32> to vector<2x32xf32>
    %28 = vector.extract_strided_slice %26 {offsets = [2, 0], sizes = [2, 32], strides = [1, 1]} : vector<4x32xf32> to vector<2x32xf32>
    %c64 = arith.constant 64 : index
    %c0_16 = arith.constant 0 : index
    %29 = vector.load %arg1[%c64, %c0_16] : memref<328x128xf32, #tpu.memory_space<vmem>>, vector<32x32xf32>
    %cst_17 = arith.constant dense<0.000000e+00> : vector<2x32xf32>
    %30 = tpu.matmul %27, %29, %cst_17 {dimension_numbers = #tpu.dot_dimension_numbers<[1], [0], [0], [1], [0, 0, 1, 1], [], []>} : vector<2x32xf32>, vector<32x32xf32>, vector<2x32xf32> -> vector<2x32xf32>
    %c96 = arith.constant 96 : index
    %c0_18 = arith.constant 0 : index
    %31 = vector.load %arg1[%c96, %c0_18] : memref<328x128xf32, #tpu.memory_space<vmem>>, vector<32x32xf32>
    %cst_19 = arith.constant dense<0.000000e+00> : vector<2x32xf32>
    %32 = tpu.matmul %28, %31, %cst_19 {dimension_numbers = #tpu.dot_dimension_numbers<[1], [0], [0], [1], [0, 0, 1, 1], [], []>} : vector<2x32xf32>, vector<32x32xf32>, vector<2x32xf32> -> vector<2x32xf32>
    %33 = arith.addf %30, %32 : vector<2x32xf32>
    %34 = arith.subf %27, %28 : vector<2x32xf32>
    %c128 = arith.constant 128 : index
    %c0_20 = arith.constant 0 : index
    %35 = vector.load %arg1[%c128, %c0_20] : memref<328x128xf32, #tpu.memory_space<vmem>>, vector<32x32xf32>
    %cst_21 = arith.constant dense<0.000000e+00> : vector<2x32xf32>
    %36 = tpu.matmul %34, %35, %cst_21 {dimension_numbers = #tpu.dot_dimension_numbers<[1], [0], [0], [1], [0, 0, 1, 1], [], []>} : vector<2x32xf32>, vector<32x32xf32>, vector<2x32xf32> -> vector<2x32xf32>
    %37 = arith.addf %33, %36 : vector<2x32xf32>
    %38 = arith.mulf %27, %28 : vector<2x32xf32>
    %c160 = arith.constant 160 : index
    %c0_22 = arith.constant 0 : index
    %39 = vector.load %arg1[%c160, %c0_22] : memref<328x128xf32, #tpu.memory_space<vmem>>, vector<32x32xf32>
    %cst_23 = arith.constant dense<0.000000e+00> : vector<2x32xf32>
    %40 = tpu.matmul %38, %39, %cst_23 {dimension_numbers = #tpu.dot_dimension_numbers<[1], [0], [0], [1], [0, 0, 1, 1], [], []>} : vector<2x32xf32>, vector<32x32xf32>, vector<2x32xf32> -> vector<2x32xf32>
    %41 = arith.addf %37, %40 : vector<2x32xf32>
    %42 = vector.extract_strided_slice %3 {offsets = [2, 0], sizes = [1, 32], strides = [1, 1]} : vector<8x128xf32> to vector<1x32xf32>
    %43 = vector.broadcast %42 : vector<1x32xf32> to vector<2x32xf32>
    %44 = arith.addf %41, %43 : vector<2x32xf32>
    %cst_24 = arith.constant 0.000000e+00 : f32
    %45 = vector.broadcast %cst_24 : f32 to vector<2x32xf32>
    %46 = arith.cmpf ogt, %44, %45 : vector<2x32xf32>
    %cst_25 = arith.constant 0.00999999977 : f32
    %47 = vector.broadcast %cst_25 : f32 to vector<2x32xf32>
    %48 = arith.mulf %47, %44 : vector<2x32xf32>
    %49 = arith.select %46, %44, %48 : vector<2x32xi1>, vector<2x32xf32>
    %c192 = arith.constant 192 : index
    %c0_26 = arith.constant 0 : index
    %50 = vector.load %arg1[%c192, %c0_26] : memref<328x128xf32, #tpu.memory_space<vmem>>, vector<32x32xf32>
    %cst_27 = arith.constant dense<0.000000e+00> : vector<2x32xf32>
    %51 = tpu.matmul %49, %50, %cst_27 {dimension_numbers = #tpu.dot_dimension_numbers<[1], [0], [0], [1], [0, 0, 1, 1], [], []>} : vector<2x32xf32>, vector<32x32xf32>, vector<2x32xf32> -> vector<2x32xf32>
    %52 = vector.extract_strided_slice %3 {offsets = [3, 0], sizes = [1, 32], strides = [1, 1]} : vector<8x128xf32> to vector<1x32xf32>
    %53 = vector.broadcast %52 : vector<1x32xf32> to vector<2x32xf32>
    %54 = arith.addf %51, %53 : vector<2x32xf32>
    %c224 = arith.constant 224 : index
    %c0_28 = arith.constant 0 : index
    %55 = vector.load %arg1[%c224, %c0_28] : memref<328x128xf32, #tpu.memory_space<vmem>>, vector<32x64xf32>
    %cst_29 = arith.constant dense<0.000000e+00> : vector<2x64xf32>
    %56 = tpu.matmul %54, %55, %cst_29 {dimension_numbers = #tpu.dot_dimension_numbers<[1], [0], [0], [1], [0, 0, 1, 1], [], []>} : vector<2x32xf32>, vector<32x64xf32>, vector<2x64xf32> -> vector<2x64xf32>
    %57 = vector.extract_strided_slice %3 {offsets = [4, 0], sizes = [1, 64], strides = [1, 1]} : vector<8x128xf32> to vector<1x64xf32>
    %58 = vector.broadcast %57 : vector<1x64xf32> to vector<2x64xf32>
    %59 = arith.addf %56, %58 : vector<2x64xf32>
    %cst_30 = arith.constant 0.000000e+00 : f32
    %60 = vector.broadcast %cst_30 : f32 to vector<2x64xf32>
    %61 = arith.cmpf ogt, %59, %60 : vector<2x64xf32>
    %cst_31 = arith.constant 0.00999999977 : f32
    %62 = vector.broadcast %cst_31 : f32 to vector<2x64xf32>
    %63 = arith.mulf %62, %59 : vector<2x64xf32>
    %64 = arith.select %61, %59, %63 : vector<2x64xi1>, vector<2x64xf32>
    %c256 = arith.constant 256 : index
    %c0_32 = arith.constant 0 : index
    %65 = vector.load %arg1[%c256, %c0_32] : memref<328x128xf32, #tpu.memory_space<vmem>>, vector<64x128xf32>
    %cst_33 = arith.constant dense<0.000000e+00> : vector<2x128xf32>
    %66 = tpu.matmul %64, %65, %cst_33 {dimension_numbers = #tpu.dot_dimension_numbers<[1], [0], [0], [1], [0, 0, 1, 1], [], []>} : vector<2x64xf32>, vector<64x128xf32>, vector<2x128xf32> -> vector<2x128xf32>
    %67 = vector.extract_strided_slice %3 {offsets = [5, 0], sizes = [1, 128], strides = [1, 1]} : vector<8x128xf32> to vector<1x128xf32>
    %68 = vector.broadcast %67 : vector<1x128xf32> to vector<2x128xf32>
    %69 = arith.addf %66, %68 : vector<2x128xf32>
    %c0_34 = arith.constant 0 : index
    %c0_35 = arith.constant 0 : index
    %70 = vector.load %arg2[%c0_34, %c0_35] : memref<2x128xf32, #tpu.memory_space<vmem>>, vector<2x128xf32>
    tpu.vector_store %arg2[%c0_34, %c0_35], %69 {strides = array<i32>} : memref<2x128xf32, #tpu.memory_space<vmem>>, vector<2x128xf32>,
    return
  }
}

</mosaic_0001>

<llo_original>
// kernel: tpu_custom_call.1
$region0: #{tpu_custom_call.1}
  #allocation0 [shape = 'u32[]', space=smem, size = 0x4, offset = 0x4, fixed_abs, tag = 'smem constant byte address 0x4 - core index']
  #allocation1 [shape = 'u32[144,128]{1,0:T(1,128)}', space=vmem, size = 0x12000, scoped, tag = 'internal scratch']
  %s0 = inlined_call_operand.hbm [shape: f32[40,128], index: 0, kind: input, shape index: {}]
  %s1 = inlined_call_operand.hbm [shape: f32[328,128], index: 1, kind: input, shape index: {}]
  %s2 = inlined_call_operand.hbm [shape: f32[2,128], index: 2, kind: output, shape index: {}]
  %s3 = sld [smem:[#allocation0]]
  $region26: #{tpu_custom_call.1} parent=0
    _
  %s5 = ssub.s32 1, %s3
  %s6 = scalar_select 0, %s5, %s3
  $region1: #{tpu_custom_call.1} parent=0
    #allocation2 [shape = 'u8[20480]{0}', space=vmem, size = 0x5000, scoped, tag = 'input window, operand 0, single buffered']
    #allocation3 [shape = 's32[1]{0}', space=sflag, size = 0x4, scoped, tag = 'scoped memory for tpu_custom_call.1']
    #allocation4 [shape = 's32[1]{0}', space=sflag, size = 0x4, scoped, tag = 'scoped memory for tpu_custom_call.1']
    #allocation5 [shape = 'u8[167936]{0}', space=vmem, size = 0x29000, scoped, tag = 'input window, operand 1, single buffered']
    #allocation6 [shape = 's32[1]{0}', space=sflag, size = 0x4, scoped, tag = 'scoped memory for tpu_custom_call.1']
    #allocation7 [shape = 'u8[1024]{0}', space=vmem, size = 0x400, scoped, tag = 'output window, operand 0, single buffered']
    %7 = vsyncpa [#allocation3], 0
    %8 = vsyncpa [#allocation6], 0
    %9 = vsyncpa [#allocation4], 0
    // Predicated region
    $region2: #{tpu_custom_call.1} parent=1 // pred_check
      _
    $region3: #{tpu_custom_call.1} parent=1 // pred_check_branch
      %11 = sbr.rel (0) target = $region5
    $region4: #{tpu_custom_call.1} parent=1 // pred_region
      %s13 = ssub.s32 640, 640
      %14 = vsyncadd [#allocation3], %s13
      %s15 = sshll.u32 [#allocation2], 4
      %s16 = int_to_ptr.vmem [resolvable:$true] %s15
      %21 = dma.hbm_to_vmem [thread:$0]  %s0, 640, %s16, [#allocation3], 128, 128, 8
    $region5: #{tpu_custom_call.1} parent=1 // pred_fallthru
      _
    // Predicated region
    $region6: #{tpu_custom_call.1} parent=1 // pred_check
      _
    $region7: #{tpu_custom_call.1} parent=1 // pred_check_branch
      %23 = sbr.rel (0) target = $region9
    $region8: #{tpu_custom_call.1} parent=1 // pred_region
      %s25 = ssub.s32 5248, 5248
      %26 = vsyncadd [#allocation6], %s25
      %s27 = sshll.u32 [#allocation5], 4
      %s28 = int_to_ptr.vmem [resolvable:$true] %s27
      %33 = dma.hbm_to_vmem [thread:$0]  %s1, 5248, %s28, [#allocation6], 128, 128, 8
    $region9: #{tpu_custom_call.1} parent=1 // pred_fallthru
      _
    // Predicated region
    $region10: #{tpu_custom_call.1} parent=1 // pred_check
      _
    $region11: #{tpu_custom_call.1} parent=1 // pred_check_branch
      %35 = sbr.rel (0) target = $region13
    $region12: #{tpu_custom_call.1} parent=1 // pred_region
      %36 = dma.done [#allocation3], 640
    $region13: #{tpu_custom_call.1} parent=1 // pred_fallthru
      _
    // Predicated region
    $region14: #{tpu_custom_call.1} parent=1 // pred_check
      _
    $region15: #{tpu_custom_call.1} parent=1 // pred_check_branch
      %38 = sbr.rel (0) target = $region17
    $region16: #{tpu_custom_call.1} parent=1 // pred_region
      %39 = dma.done [#allocation6], 5248
    $region17: #{tpu_custom_call.1} parent=1 // pred_fallthru
      _
    %v40 = vld [vmem:[#allocation2] sm:$0xff]
    %v41 = vld [vmem:[#allocation2 + $0x8] sm:$0xff]
    %v42 = vld [vmem:[#allocation2 + $0x10] sm:$0xff]
    %v43 = vld [vmem:[#allocation2 + $0x18] sm:$0xff]
    %v44 = vld [vmem:[#allocation2 + $0x20] sm:$0xf]
    %v45 = vld [vmem:[#allocation5 + $0x140] sm:$0xff]
    %v46 = vld [vmem:[#allocation5] sm:$0xff]
    %v47 = vld [vmem:[#allocation5 + $0x8] sm:$0xff]
    %v48 = vld [vmem:[#allocation5 + $0x10] sm:$0xff]
    %v49 = vld [vmem:[#allocation5 + $0x18] sm:$0xff]
    %vm50 = vcmask 130048
    %v52 = vsel %vm50, %v40, 0
    %v55 = vsel %vm50, %v41, 0
    %57 = vmatprep.subr.mxu0 0.0
    %58 = vmatpush1.msra.mxu0 %v42
    %59 = vmatprep.subr.mxu0 0.0
    %60 = vmatpush1.msra.mxu0 %v43
    %61 = vmatprep.subr.mxu0 0.0
    %62 = vmatpush1.msra.mxu0 0.0
    %63 = vmatprep.subr.mxu0 0.0
    %64 = vmatpush1.msra.mxu0 0.0
    %65 = vmatprep.subr.mxu0 0.0
    %66 = vmatpush1.msra.mxu0 0.0
    %67 = vmatprep.subr.mxu0 0.0
    %68 = vmatpush1.msra.mxu0 0.0
    %69 = vmatprep.subr.mxu0 0.0
    %70 = vmatpush1.msra.mxu0 0.0
    %71 = vmatprep.subr.mxu0 0.0
    %72 = vmatpush1.msra.mxu0 0.0
    %73 = vmatprep.subr.mxu0 0.0
    %74 = vmatpush1.msra.mxu0 0.0
    %75 = vmatprep.subr.mxu0 0.0
    %76 = vmatpush1.msra.mxu0 0.0
    %77 = vmatprep.subr.mxu0 0.0
    %78 = vmatpush1.msra.mxu0 0.0
    %79 = vmatprep.subr.mxu0 0.0
    %80 = vmatpush1.msra.mxu0 0.0
    %81 = vmatprep.subr.mxu0 0.0
    %82 = vmatpush1.msra.mxu0 0.0
    %83 = vmatprep.subr.mxu0 0.0
    %84 = vmatpush1.msra.mxu0 0.0
    %85 = vmatprep.subr.mxu0 0.0
    %86 = vmatpush1.msra.mxu0 0.0
    %87 = vmatprep.subr.mxu0 0.0
    %88 = vmatpush1.msra.mxu0 0.0
    %89 = vmatprep.subr.mxu0 0.0
    %90 = vmatpush1.msra.mxu0 0.0
    %91 = vmatprep.subr.mxu0 0.0
    %92 = vmatpush1.msra.mxu0 0.0
    %93 = vmatprep.subr.mxu0 0.0
    %94 = vmatpush1.msra.mxu0 0.0
    %95 = vmatprep.subr.mxu0 0.0
    %96 = vmatpush1.msra.mxu0 0.0
    %97 = vmatprep.subr.mxu0 0.0
    %98 = vmatpush1.msra.mxu0 0.0
    %99 = vmatprep.subr.mxu0 0.0
    %100 = vmatpush1.msra.mxu0 0.0
    %101 = vmatprep.subr.mxu0 0.0
    %102 = vmatpush1.msra.mxu0 0.0
    %103 = vmatprep.subr.mxu0 0.0
    %104 = vmatpush1.msra.mxu0 0.0
    %105 = vmatprep.subr.mxu0 0.0
    %106 = vmatpush1.msra.mxu0 0.0
    %107 = vmatprep.subr.mxu0 0.0
    %108 = vmatpush1.msra.mxu0 0.0
    %109 = vmatprep.subr.mxu0 0.0
    %110 = vmatpush1.msra.mxu0 0.0
    %111 = vmatprep.subr.mxu0 0.0
    %112 = vmatpush1.msra.mxu0 0.0
    %113 = vmatprep.subr.mxu0 0.0
    %114 = vmatpush1.msra.mxu0 0.0
    %115 = vmatprep.subr.mxu0 0.0
    %116 = vmatpush1.msra.mxu0 0.0
    %117 = vmatprep.subr.mxu0 0.0
    %118 = vmatpush1.msra.mxu0 0.0
    %119 = vmatprep.subr.mxu0 0.0
    %120 = vmatpush1.msra.mxu0 0.0
    %121 = vmatprep.mubr.f32.mxu0 0.0
    %122 = vmatmul.mubr.f32.gmra.mrb[0].mxu0 %v52
    %v123 = vpop.f32.mrb[0].mxu0
    %v124 = vadd.f32 0.0, %v123
    %v125 = vpop.f32.mrb[0].mxu0
    %126 = vmatprep.mubr.f32.mxu0 0.0
    %127 = vmatmul.mubr.f32.gmra.mrb[0].mxu0 %v55
    %v128 = vpop.f32.mrb[0].mxu0
    %v129 = vadd.f32 0.0, %v128
    %v130 = vpop.f32.mrb[0].mxu0
    %131 = vdwg.mxu0
    %v132 = vlaneseq
    %v133 = vshrl.u32 %v132, 7
    %v134 = vsub.s32 0, %v133
    %v135 = vrot.slane %v45, %v134
    %vm136 = vcmask 261120
    %v138 = vsel %vm136, %v124, 0
    %v141 = vsel %vm136, %v129, 0
    %143 = vmatprep.subr.mxu0 0.0
    %144 = vmatpush1.msra.mxu0 %v46
    %145 = vmatprep.subr.mxu0 0.0
    %146 = vmatpush1.msra.mxu0 %v47
    %147 = vmatprep.subr.mxu0 0.0
    %148 = vmatpush1.msra.mxu0 %v48
    %149 = vmatprep.subr.mxu0 0.0
    %150 = vmatpush1.msra.mxu0 %v49
    %151 = vmatprep.subr.mxu0 0.0
    %152 = vmatpush1.msra.mxu0 0.0
    %153 = vmatprep.subr.mxu0 0.0
    %154 = vmatpush1.msra.mxu0 0.0
    %155 = vmatprep.subr.mxu0 0.0
    %156 = vmatpush1.msra.mxu0 0.0
    %157 = vmatprep.subr.mxu0 0.0
    %158 = vmatpush1.msra.mxu0 0.0
    %159 = vmatprep.subr.mxu0 0.0
    %160 = vmatpush1.msra.mxu0 0.0
    %161 = vmatprep.subr.mxu0 0.0
    %162 = vmatpush1.msra.mxu0 0.0
    %163 = vmatprep.subr.mxu0 0.0
    %164 = vmatpush1.msra.mxu0 0.0
    %165 = vmatprep.subr.mxu0 0.0
    %166 = vmatpush1.msra.mxu0 0.0
    %167 = vmatprep.subr.mxu0 0.0
    %168 = vmatpush1.msra.mxu0 0.0
    %169 = vmatprep.subr.mxu0 0.0
    %170 = vmatpush1.msra.mxu0 0.0
    %171 = vmatprep.subr.mxu0 0.0
    %172 = vmatpush1.msra.mxu0 0.0
    %173 = vmatprep.subr.mxu0 0.0
    %174 = vmatpush1.msra.mxu0 0.0
    %175 = vmatprep.subr.mxu0 0.0
    %176 = vmatpush1.msra.mxu0 0.0
    %177 = vmatprep.subr.mxu0 0.0
    %178 = vmatpush1.msra.mxu0 0.0
    %179 = vmatprep.subr.mxu0 0.0
    %180 = vmatpush1.msra.mxu0 0.0
    %181 = vmatprep.subr.mxu0 0.0
    %182 = vmatpush1.msra.mxu0 0.0
    %183 = vmatprep.subr.mxu0 0.0
    %184 = vmatpush1.msra.mxu0 0.0
    %185 = vmatprep.subr.mxu0 0.0
    %186 = vmatpush1.msra.mxu0 0.0
    %187 = vmatprep.subr.mxu0 0.0
    %188 = vmatpush1.msra.mxu0 0.0
    %189 = vmatprep.subr.mxu0 0.0
    %190 = vmatpush1.msra.mxu0 0.0
    %191 = vmatprep.subr.mxu0 0.0
    %192 = vmatpush1.msra.mxu0 0.0
    %193 = vmatprep.subr.mxu0 0.0
    %194 = vmatpush1.msra.mxu0 0.0
    %195 = vmatprep.subr.mxu0 0.0
    %196 = vmatpush1.msra.mxu0 0.0
    %197 = vmatprep.subr.mxu0 0.0
    %198 = vmatpush1.msra.mxu0 0.0
    %199 = vmatprep.subr.mxu0 0.0
    %200 = vmatpush1.msra.mxu0 0.0
    %201 = vmatprep.subr.mxu0 0.0
    %202 = vmatpush1.msra.mxu0 0.0
    %203 = vmatprep.subr.mxu0 0.0
    %204 = vmatpush1.msra.mxu0 0.0
    %205 = vmatprep.subr.mxu0 0.0
    %206 = vmatpush1.msra.mxu0 0.0
    %207 = vmatprep.mubr.f32.mxu0 0.0
    %208 = vmatmul.mubr.f32.gmra.mrb[0].mxu0 %v138
    %v209 = vpop.f32.mrb[0].mxu0
    %v210 = vadd.f32 %v135, %v209
    %v211 = vpop.f32.mrb[0].mxu0
    %212 = vmatprep.mubr.f32.mxu0 0.0
    %213 = vmatmul.mubr.f32.gmra.mrb[0].mxu0 %v141
    %v214 = vpop.f32.mrb[0].mxu0
    %v215 = vadd.f32 %v135, %v214
    %v216 = vpop.f32.mrb[0].mxu0
    %217 = vdwg.mxu0
    %vm218 = vcmp.gt.f32.partialorder %v210, 0.0
    %vm219 = vcmp.gt.f32.partialorder %v215, 0.0
    %v220 = vmul.f32 %v210, 0.01
    %v221 = vmul.f32 %v215, 0.01
    %v222 = vsel %vm218, %v210, %v220
    %v223 = vsel %vm219, %v215, %v221
    %v224 = vld [vmem:[#allocation5 + $0x20] sm:$0xff]
    %v225 = vld [vmem:[#allocation5 + $0x28] sm:$0xff]
    %v226 = vld [vmem:[#allocation5 + $0x30] sm:$0xff]
    %v227 = vld [vmem:[#allocation5 + $0x38] sm:$0xff]
    %228 = vmatprep.subr.mxu0 0.0
    %229 = vmatpush1.msra.mxu0 %v222
    %230 = vmatprep.subr.mxu0 0.0
    %231 = vmatpush1.msra.mxu0 %v223
    %232 = vmatprep.subr.mxu0 0.0
    %233 = vmatpush1.msra.mxu0 0.0
    %234 = vmatprep.subr.mxu0 0.0
    %235 = vmatpush1.msra.mxu0 0.0
    %236 = vmatprep.subr.mxu0 0.0
    %237 = vmatpush1.msra.mxu0 0.0
    %238 = vmatprep.subr.mxu0 0.0
    %239 = vmatpush1.msra.mxu0 0.0
    %240 = vmatprep.subr.mxu0 0.0
    %241 = vmatpush1.msra.mxu0 0.0
    %242 = vmatprep.subr.mxu0 0.0
    %243 = vmatpush1.msra.mxu0 0.0
    %244 = vmatprep.subr.mxu0 0.0
    %245 = vmatpush1.msra.mxu0 0.0
    %246 = vmatprep.subr.mxu0 0.0
    %247 = vmatpush1.msra.mxu0 0.0
    %248 = vmatprep.subr.mxu0 0.0
    %249 = vmatpush1.msra.mxu0 0.0
    %250 = vmatprep.subr.mxu0 0.0
    %251 = vmatpush1.msra.mxu0 0.0
    %252 = vmatprep.subr.mxu0 0.0
    %253 = vmatpush1.msra.mxu0 0.0
    %254 = vmatprep.subr.mxu0 0.0
    %255 = vmatpush1.msra.mxu0 0.0
    %256 = vmatprep.subr.mxu0 0.0
    %257 = vmatpush1.msra.mxu0 0.0
    %258 = vmatprep.subr.mxu0 0.0
    %259 = vmatpush1.msra.mxu0 0.0
    %260 = vmatprep.subr.mxu0 0.0
    %261 = vmatpush1.msra.mxu0 0.0
    %262 = vmatprep.subr.mxu0 0.0
    %263 = vmatpush1.msra.mxu0 0.0
    %264 = vmatprep.subr.mxu0 0.0
    %265 = vmatpush1.msra.mxu0 0.0
    %266 = vmatprep.subr.mxu0 0.0
    %267 = vmatpush1.msra.mxu0 0.0
    %268 = vmatprep.subr.mxu0 0.0
    %269 = vmatpush1.msra.mxu0 0.0
    %270 = vmatprep.subr.mxu0 0.0
    %271 = vmatpush1.msra.mxu0 0.0
    %272 = vmatprep.subr.mxu0 0.0
    %273 = vmatpush1.msra.mxu0 0.0
    %274 = vmatprep.subr.mxu0 0.0
    %275 = vmatpush1.msra.mxu0 0.0
    %276 = vmatprep.subr.mxu0 0.0
    %277 = vmatpush1.msra.mxu0 0.0
    %278 = vmatprep.subr.mxu0 0.0
    %279 = vmatpush1.msra.mxu0 0.0
    %280 = vmatprep.subr.mxu0 0.0
    %281 = vmatpush1.msra.mxu0 0.0
    %282 = vmatprep.subr.mxu0 0.0
    %283 = vmatpush1.msra.mxu0 0.0
    %284 = vmatprep.subr.mxu0 0.0
    %285 = vmatpush1.msra.mxu0 0.0
    %286 = vmatprep.subr.mxu0 0.0
    %287 = vmatpush1.msra.mxu0 0.0
    %288 = vmatprep.subr.mxu0 0.0
    %289 = vmatpush1.msra.mxu0 0.0
    %290 = vmatprep.subr.mxu0 0.0
    %291 = vmatpush1.msra.mxu0 0.0
    %292 = vmatprep.mubr.f32.mxu0 0.0
    %293 = vmatmul.mubr.f32.gmra.mrb[0].mxu0 %v52
    %v294 = vpop.f32.mrb[0].mxu0
    %v295 = vadd.f32 0.0, %v294
    %v296 = vpop.f32.mrb[0].mxu0
    %297 = vmatprep.mubr.f32.mxu0 0.0
    %298 = vmatmul.mubr.f32.gmra.mrb[0].mxu0 %v55
    %v299 = vpop.f32.mrb[0].mxu0
    %v300 = vadd.f32 0.0, %v299
    %v301 = vpop.f32.mrb[0].mxu0
    %302 = vdwg.mxu0
    %v303 = vlaneseq
    %v304 = vshrl.u32 %v303, 7
    %v305 = vsub.s32 1, %v304
    %v306 = vrot.slane %v45, %v305
    %v308 = vsel %vm136, %v295, 0
    %v311 = vsel %vm136, %v300, 0
    %313 = vmatprep.subr.mxu0 0.0
    %314 = vmatpush1.msra.mxu0 %v224
    %315 = vmatprep.subr.mxu0 0.0
    %316 = vmatpush1.msra.mxu0 %v225
    %317 = vmatprep.subr.mxu0 0.0
    %318 = vmatpush1.msra.mxu0 %v226
    %319 = vmatprep.subr.mxu0 0.0
    %320 = vmatpush1.msra.mxu0 %v227
    %321 = vmatprep.subr.mxu0 0.0
    %322 = vmatpush1.msra.mxu0 0.0
    %323 = vmatprep.subr.mxu0 0.0
    %324 = vmatpush1.msra.mxu0 0.0
    %325 = vmatprep.subr.mxu0 0.0
    %326 = vmatpush1.msra.mxu0 0.0
    %327 = vmatprep.subr.mxu0 0.0
    %328 = vmatpush1.msra.mxu0 0.0
    %329 = vmatprep.subr.mxu0 0.0
    %330 = vmatpush1.msra.mxu0 0.0
    %331 = vmatprep.subr.mxu0 0.0
    %332 = vmatpush1.msra.mxu0 0.0
    %333 = vmatprep.subr.mxu0 0.0
    %334 = vmatpush1.msra.mxu0 0.0
    %335 = vmatprep.subr.mxu0 0.0
    %336 = vmatpush1.msra.mxu0 0.0
    %337 = vmatprep.subr.mxu0 0.0
    %338 = vmatpush1.msra.mxu0 0.0
    %339 = vmatprep.subr.mxu0 0.0
    %340 = vmatpush1.msra.mxu0 0.0
    %341 = vmatprep.subr.mxu0 0.0
    %342 = vmatpush1.msra.mxu0 0.0
    %343 = vmatprep.subr.mxu0 0.0
    %344 = vmatpush1.msra.mxu0 0.0
    %345 = vmatprep.subr.mxu0 0.0
    %346 = vmatpush1.msra.mxu0 0.0
    %347 = vmatprep.subr.mxu0 0.0
    %348 = vmatpush1.msra.mxu0 0.0
    %349 = vmatprep.subr.mxu0 0.0
    %350 = vmatpush1.msra.mxu0 0.0
    %351 = vmatprep.subr.mxu0 0.0
    %352 = vmatpush1.msra.mxu0 0.0
    %353 = vmatprep.subr.mxu0 0.0
    %354 = vmatpush1.msra.mxu0 0.0
    %355 = vmatprep.subr.mxu0 0.0
    %356 = vmatpush1.msra.mxu0 0.0
    %357 = vmatprep.subr.mxu0 0.0
    %358 = vmatpush1.msra.mxu0 0.0
    %359 = vmatprep.subr.mxu0 0.0
    %360 = vmatpush1.msra.mxu0 0.0
    %361 = vmatprep.subr.mxu0 0.0
    %362 = vmatpush1.msra.mxu0 0.0
    %363 = vmatprep.subr.mxu0 0.0
    %364 = vmatpush1.msra.mxu0 0.0
    %365 = vmatprep.subr.mxu0 0.0
    %366 = vmatpush1.msra.mxu0 0.0
    %367 = vmatprep.subr.mxu0 0.0
    %368 = vmatpush1.msra.mxu0 0.0
    %369 = vmatprep.subr.mxu0 0.0
    %370 = vmatpush1.msra.mxu0 0.0
    %371 = vmatprep.subr.mxu0 0.0
    %372 = vmatpush1.msra.mxu0 0.0
    %373 = vmatprep.subr.mxu0 0.0
    %374 = vmatpush1.msra.mxu0 0.0
    %375 = vmatprep.subr.mxu0 0.0
    %376 = vmatpush1.msra.mxu0 0.0
    %377 = vmatprep.mubr.f32.mxu0 0.0
    %378 = vmatmul.mubr.f32.gmra.mrb[0].mxu0 %v308
    %v379 = vpop.f32.mrb[0].mxu0
    %v380 = vadd.f32 %v306, %v379
    %v381 = vpop.f32.mrb[0].mxu0
    %382 = vmatprep.mubr.f32.mxu0 0.0
    %383 = vmatmul.mubr.f32.gmra.mrb[0].mxu0 %v311
    %v384 = vpop.f32.mrb[0].mxu0
    %v385 = vadd.f32 %v306, %v384
    %v386 = vpop.f32.mrb[0].mxu0
    %387 = vdwg.mxu0
    %vm388 = vcmp.gt.f32.partialorder %v380, 0.0
    %vm389 = vcmp.gt.f32.partialorder %v385, 0.0
    %v390 = vmul.f32 %v380, 0.01
    %v391 = vmul.f32 %v385, 0.01
    %v392 = vsel %vm388, %v380, %v390
    %v393 = vsel %vm389, %v385, %v391
    %v395 = vsel %vm50, %v44, 0
    %397 = vmatprep.subr.mxu0 0.0
    %398 = vmatpush1.msra.mxu0 %v392
    %399 = vmatprep.subr.mxu0 0.0
    %400 = vmatpush1.msra.mxu0 %v393
    %401 = vmatprep.subr.mxu0 0.0
    %402 = vmatpush1.msra.mxu0 0.0
    %403 = vmatprep.subr.mxu0 0.0
    %404 = vmatpush1.msra.mxu0 0.0
    %405 = vmatprep.subr.mxu0 0.0
    %406 = vmatpush1.msra.mxu0 0.0
    %407 = vmatprep.subr.mxu0 0.0
    %408 = vmatpush1.msra.mxu0 0.0
    %409 = vmatprep.subr.mxu0 0.0
    %410 = vmatpush1.msra.mxu0 0.0
    %411 = vmatprep.subr.mxu0 0.0
    %412 = vmatpush1.msra.mxu0 0.0
    %413 = vmatprep.subr.mxu0 0.0
    %414 = vmatpush1.msra.mxu0 0.0
    %415 = vmatprep.subr.mxu0 0.0
    %416 = vmatpush1.msra.mxu0 0.0
    %417 = vmatprep.subr.mxu0 0.0
    %418 = vmatpush1.msra.mxu0 0.0
    %419 = vmatprep.subr.mxu0 0.0
    %420 = vmatpush1.msra.mxu0 0.0
    %421 = vmatprep.subr.mxu0 0.0
    %422 = vmatpush1.msra.mxu0 0.0
    %423 = vmatprep.subr.mxu0 0.0
    %424 = vmatpush1.msra.mxu0 0.0
    %425 = vmatprep.subr.mxu0 0.0
    %426 = vmatpush1.msra.mxu0 0.0
    %427 = vmatprep.subr.mxu0 0.0
    %428 = vmatpush1.msra.mxu0 0.0
    %429 = vmatprep.subr.mxu0 0.0
    %430 = vmatpush1.msra.mxu0 0.0
    %431 = vmatprep.subr.mxu0 0.0
    %432 = vmatpush1.msra.mxu0 0.0
    %433 = vmatprep.subr.mxu0 0.0
    %434 = vmatpush1.msra.mxu0 0.0
    %435 = vmatprep.subr.mxu0 0.0
    %436 = vmatpush1.msra.mxu0 0.0
    %437 = vmatprep.subr.mxu0 0.0
    %438 = vmatpush1.msra.mxu0 0.0
    %439 = vmatprep.subr.mxu0 0.0
    %440 = vmatpush1.msra.mxu0 0.0
    %441 = vmatprep.subr.mxu0 0.0
    %442 = vmatpush1.msra.mxu0 0.0
    %443 = vmatprep.subr.mxu0 0.0
    %444 = vmatpush1.msra.mxu0 0.0
    %445 = vmatprep.subr.mxu0 0.0
    %446 = vmatpush1.msra.mxu0 0.0
    %447 = vmatprep.subr.mxu0 0.0
    %448 = vmatpush1.msra.mxu0 0.0
    %449 = vmatprep.subr.mxu0 0.0
    %450 = vmatpush1.msra.mxu0 0.0
    %451 = vmatprep.subr.mxu0 0.0
    %452 = vmatpush1.msra.mxu0 0.0
    %453 = vmatprep.subr.mxu0 0.0
    %454 = vmatpush1.msra.mxu0 0.0
    %455 = vmatprep.subr.mxu0 0.0
    %456 = vmatpush1.msra.mxu0 0.0
    %457 = vmatprep.subr.mxu0 0.0
    %458 = vmatpush1.msra.mxu0 0.0
    %459 = vmatprep.subr.mxu0 0.0
    %460 = vmatpush1.msra.mxu0 0.0
    %461 = vmatprep.mubr.f32.mxu0 0.0
    %462 = vmatmul.mubr.f32.gmra.mrb[0].mxu0 %v395
    %v463 = vpop.f32.mrb[0].mxu0
    %v464 = vadd.f32 0.0, %v463
    %v465 = vpop.f32.mrb[0].mxu0
    %466 = vdwg.mxu0
    %v467 = vld [vmem:[#allocation5 + $0x40] sm:$0xff]
    %v468 = vld [vmem:[#allocation5 + $0x48] sm:$0xff]
    %v469 = vld [vmem:[#allocation5 + $0x50] sm:$0xff]
    %v470 = vld [vmem:[#allocation5 + $0x58] sm:$0xff]
    %v471 = vld [vmem:[#allocation5 + $0x60] sm:$0xff]
    %v472 = vld [vmem:[#allocation5 + $0x68] sm:$0xff]
    %v473 = vld [vmem:[#allocation5 + $0x70] sm:$0xff]
    %v474 = vld [vmem:[#allocation5 + $0x78] sm:$0xff]
    %v476 = vrot.slane %v464, 2
    %v477 = vsel %vm136, %v476, 0
    %479 = vmatprep.subr.mxu0 0.0
    %480 = vmatpush1.msra.mxu0 %v471
    %481 = vmatprep.subr.mxu0 0.0
    %482 = vmatpush1.msra.mxu0 %v472
    %483 = vmatprep.subr.mxu0 0.0
    %484 = vmatpush1.msra.mxu0 %v473
    %485 = vmatprep.subr.mxu0 0.0
    %486 = vmatpush1.msra.mxu0 %v474
    %487 = vmatprep.subr.mxu0 0.0
    %488 = vmatpush1.msra.mxu0 0.0
    %489 = vmatprep.subr.mxu0 0.0
    %490 = vmatpush1.msra.mxu0 0.0
    %491 = vmatprep.subr.mxu0 0.0
    %492 = vmatpush1.msra.mxu0 0.0
    %493 = vmatprep.subr.mxu0 0.0
    %494 = vmatpush1.msra.mxu0 0.0
    %495 = vmatprep.subr.mxu0 0.0
    %496 = vmatpush1.msra.mxu0 0.0
    %497 = vmatprep.subr.mxu0 0.0
    %498 = vmatpush1.msra.mxu0 0.0
    %499 = vmatprep.subr.mxu0 0.0
    %500 = vmatpush1.msra.mxu0 0.0
    %501 = vmatprep.subr.mxu0 0.0
    %502 = vmatpush1.msra.mxu0 0.0
    %503 = vmatprep.subr.mxu0 0.0
    %504 = vmatpush1.msra.mxu0 0.0
    %505 = vmatprep.subr.mxu0 0.0
    %506 = vmatpush1.msra.mxu0 0.0
    %507 = vmatprep.subr.mxu0 0.0
    %508 = vmatpush1.msra.mxu0 0.0
    %509 = vmatprep.subr.mxu0 0.0
    %510 = vmatpush1.msra.mxu0 0.0
    %511 = vmatprep.subr.mxu0 0.0
    %512 = vmatpush1.msra.mxu0 0.0
    %513 = vmatprep.subr.mxu0 0.0
    %514 = vmatpush1.msra.mxu0 0.0
    %515 = vmatprep.subr.mxu0 0.0
    %516 = vmatpush1.msra.mxu0 0.0
    %517 = vmatprep.subr.mxu0 0.0
    %518 = vmatpush1.msra.mxu0 0.0
    %519 = vmatprep.subr.mxu0 0.0
    %520 = vmatpush1.msra.mxu0 0.0
    %521 = vmatprep.subr.mxu0 0.0
    %522 = vmatpush1.msra.mxu0 0.0
    %523 = vmatprep.subr.mxu0 0.0
    %524 = vmatpush1.msra.mxu0 0.0
    %525 = vmatprep.subr.mxu0 0.0
    %526 = vmatpush1.msra.mxu0 0.0
    %527 = vmatprep.subr.mxu0 0.0
    %528 = vmatpush1.msra.mxu0 0.0
    %529 = vmatprep.subr.mxu0 0.0
    %530 = vmatpush1.msra.mxu0 0.0
    %531 = vmatprep.subr.mxu0 0.0
    %532 = vmatpush1.msra.mxu0 0.0
    %533 = vmatprep.subr.mxu0 0.0
    %534 = vmatpush1.msra.mxu0 0.0
    %535 = vmatprep.subr.mxu0 0.0
    %536 = vmatpush1.msra.mxu0 0.0
    %537 = vmatprep.subr.mxu0 0.0
    %538 = vmatpush1.msra.mxu0 0.0
    %539 = vmatprep.subr.mxu0 0.0
    %540 = vmatpush1.msra.mxu0 0.0
    %541 = vmatprep.subr.mxu0 0.0
    %542 = vmatpush1.msra.mxu0 0.0
    %543 = vmatprep.mubr.f32.mxu0 0.0
    %544 = vmatmul.mubr.f32.gmra.mrb[0].mxu0 %v477
    %v545 = vpop.f32.mrb[0].mxu0
    %v546 = vadd.f32 0.0, %v545
    %v547 = vpop.f32.mrb[0].mxu0
    %548 = vdwg.mxu0
    %v549 = vsel %vm136, %v464, 0
    %551 = vmatprep.subr.mxu0 0.0
    %552 = vmatpush1.msra.mxu0 %v467
    %553 = vmatprep.subr.mxu0 0.0
    %554 = vmatpush1.msra.mxu0 %v468
    %555 = vmatprep.subr.mxu0 0.0
    %556 = vmatpush1.msra.mxu0 %v469
    %557 = vmatprep.subr.mxu0 0.0
    %558 = vmatpush1.msra.mxu0 %v470
    %559 = vmatprep.subr.mxu0 0.0
    %560 = vmatpush1.msra.mxu0 0.0
    %561 = vmatprep.subr.mxu0 0.0
    %562 = vmatpush1.msra.mxu0 0.0
    %563 = vmatprep.subr.mxu0 0.0
    %564 = vmatpush1.msra.mxu0 0.0
    %565 = vmatprep.subr.mxu0 0.0
    %566 = vmatpush1.msra.mxu0 0.0
    %567 = vmatprep.subr.mxu0 0.0
    %568 = vmatpush1.msra.mxu0 0.0
    %569 = vmatprep.subr.mxu0 0.0
    %570 = vmatpush1.msra.mxu0 0.0
    %571 = vmatprep.subr.mxu0 0.0
    %572 = vmatpush1.msra.mxu0 0.0
    %573 = vmatprep.subr.mxu0 0.0
    %574 = vmatpush1.msra.mxu0 0.0
    %575 = vmatprep.subr.mxu0 0.0
    %576 = vmatpush1.msra.mxu0 0.0
    %577 = vmatprep.subr.mxu0 0.0
    %578 = vmatpush1.msra.mxu0 0.0
    %579 = vmatprep.subr.mxu0 0.0
    %580 = vmatpush1.msra.mxu0 0.0
    %581 = vmatprep.subr.mxu0 0.0
    %582 = vmatpush1.msra.mxu0 0.0
    %583 = vmatprep.subr.mxu0 0.0
    %584 = vmatpush1.msra.mxu0 0.0
    %585 = vmatprep.subr.mxu0 0.0
    %586 = vmatpush1.msra.mxu0 0.0
    %587 = vmatprep.subr.mxu0 0.0
    %588 = vmatpush1.msra.mxu0 0.0
    %589 = vmatprep.subr.mxu0 0.0
    %590 = vmatpush1.msra.mxu0 0.0
    %591 = vmatprep.subr.mxu0 0.0
    %592 = vmatpush1.msra.mxu0 0.0
    %593 = vmatprep.subr.mxu0 0.0
    %594 = vmatpush1.msra.mxu0 0.0
    %595 = vmatprep.subr.mxu0 0.0
    %596 = vmatpush1.msra.mxu0 0.0
    %597 = vmatprep.subr.mxu0 0.0
    %598 = vmatpush1.msra.mxu0 0.0
    %599 = vmatprep.subr.mxu0 0.0
    %600 = vmatpush1.msra.mxu0 0.0
    %601 = vmatprep.subr.mxu0 0.0
    %602 = vmatpush1.msra.mxu0 0.0
    %603 = vmatprep.subr.mxu0 0.0
    %604 = vmatpush1.msra.mxu0 0.0
    %605 = vmatprep.subr.mxu0 0.0
    %606 = vmatpush1.msra.mxu0 0.0
    %607 = vmatprep.subr.mxu0 0.0
    %608 = vmatpush1.msra.mxu0 0.0
    %609 = vmatprep.subr.mxu0 0.0
    %610 = vmatpush1.msra.mxu0 0.0
    %611 = vmatprep.subr.mxu0 0.0
    %612 = vmatpush1.msra.mxu0 0.0
    %613 = vmatprep.subr.mxu0 0.0
    %614 = vmatpush1.msra.mxu0 0.0
    %615 = vmatprep.mubr.f32.mxu0 0.0
    %616 = vmatmul.mubr.f32.gmra.mrb[0].mxu0 %v549
    %v617 = vpop.f32.mrb[0].mxu0
    %v618 = vadd.f32 %v546, %v617
    %v619 = vpop.f32.mrb[0].mxu0
    %620 = vdwg.mxu0
    %v622 = vsub.f32 %v464, %v476
    %v623 = vld [vmem:[#allocation5 + $0x80] sm:$0xff]
    %v624 = vld [vmem:[#allocation5 + $0x88] sm:$0xff]
    %v625 = vld [vmem:[#allocation5 + $0x90] sm:$0xff]
    %v626 = vld [vmem:[#allocation5 + $0x98] sm:$0xff]
    %v628 = vsel %vm136, %v622, 0
    %630 = vmatprep.subr.mxu0 0.0
    %631 = vmatpush1.msra.mxu0 %v623
    %632 = vmatprep.subr.mxu0 0.0
    %633 = vmatpush1.msra.mxu0 %v624
    %634 = vmatprep.subr.mxu0 0.0
    %635 = vmatpush1.msra.mxu0 %v625
    %636 = vmatprep.subr.mxu0 0.0
    %637 = vmatpush1.msra.mxu0 %v626
    %638 = vmatprep.subr.mxu0 0.0
    %639 = vmatpush1.msra.mxu0 0.0
    %640 = vmatprep.subr.mxu0 0.0
    %641 = vmatpush1.msra.mxu0 0.0
    %642 = vmatprep.subr.mxu0 0.0
    %643 = vmatpush1.msra.mxu0 0.0
    %644 = vmatprep.subr.mxu0 0.0
    %645 = vmatpush1.msra.mxu0 0.0
    %646 = vmatprep.subr.mxu0 0.0
    %647 = vmatpush1.msra.mxu0 0.0
    %648 = vmatprep.subr.mxu0 0.0
    %649 = vmatpush1.msra.mxu0 0.0
    %650 = vmatprep.subr.mxu0 0.0
    %651 = vmatpush1.msra.mxu0 0.0
    %652 = vmatprep.subr.mxu0 0.0
    %653 = vmatpush1.msra.mxu0 0.0
    %654 = vmatprep.subr.mxu0 0.0
    %655 = vmatpush1.msra.mxu0 0.0
    %656 = vmatprep.subr.mxu0 0.0
    %657 = vmatpush1.msra.mxu0 0.0
    %658 = vmatprep.subr.mxu0 0.0
    %659 = vmatpush1.msra.mxu0 0.0
    %660 = vmatprep.subr.mxu0 0.0
    %661 = vmatpush1.msra.mxu0 0.0
    %662 = vmatprep.subr.mxu0 0.0
    %663 = vmatpush1.msra.mxu0 0.0
    %664 = vmatprep.subr.mxu0 0.0
    %665 = vmatpush1.msra.mxu0 0.0
    %666 = vmatprep.subr.mxu0 0.0
    %667 = vmatpush1.msra.mxu0 0.0
    %668 = vmatprep.subr.mxu0 0.0
    %669 = vmatpush1.msra.mxu0 0.0
    %670 = vmatprep.subr.mxu0 0.0
    %671 = vmatpush1.msra.mxu0 0.0
    %672 = vmatprep.subr.mxu0 0.0
    %673 = vmatpush1.msra.mxu0 0.0
    %674 = vmatprep.subr.mxu0 0.0
    %675 = vmatpush1.msra.mxu0 0.0
    %676 = vmatprep.subr.mxu0 0.0
    %677 = vmatpush1.msra.mxu0 0.0
    %678 = vmatprep.subr.mxu0 0.0
    %679 = vmatpush1.msra.mxu0 0.0
    %680 = vmatprep.subr.mxu0 0.0
    %681 = vmatpush1.msra.mxu0 0.0
    %682 = vmatprep.subr.mxu0 0.0
    %683 = vmatpush1.msra.mxu0 0.0
    %684 = vmatprep.subr.mxu0 0.0
    %685 = vmatpush1.msra.mxu0 0.0
    %686 = vmatprep.subr.mxu0 0.0
    %687 = vmatpush1.msra.mxu0 0.0
    %688 = vmatprep.subr.mxu0 0.0
    %689 = vmatpush1.msra.mxu0 0.0
    %690 = vmatprep.subr.mxu0 0.0
    %691 = vmatpush1.msra.mxu0 0.0
    %692 = vmatprep.subr.mxu0 0.0
    %693 = vmatpush1.msra.mxu0 0.0
    %694 = vmatprep.mubr.f32.mxu0 0.0
    %695 = vmatmul.mubr.f32.gmra.mrb[0].mxu0 %v628
    %v696 = vpop.f32.mrb[0].mxu0
    %v697 = vadd.f32 0.0, %v696
    %v698 = vpop.f32.mrb[0].mxu0
    %699 = vdwg.mxu0
    %v700 = vadd.f32 %v618, %v697
    %v701 = vmul.f32 %v464, %v476
    %v702 = vld [vmem:[#allocation5 + $0xa0] sm:$0xff]
    %v703 = vld [vmem:[#allocation5 + $0xa8] sm:$0xff]
    %v704 = vld [vmem:[#allocation5 + $0xb0] sm:$0xff]
    %v705 = vld [vmem:[#allocation5 + $0xb8] sm:$0xff]
    %v707 = vsel %vm136, %v701, 0
    %709 = vmatprep.subr.mxu0 0.0
    %710 = vmatpush1.msra.mxu0 %v702
    %711 = vmatprep.subr.mxu0 0.0
    %712 = vmatpush1.msra.mxu0 %v703
    %713 = vmatprep.subr.mxu0 0.0
    %714 = vmatpush1.msra.mxu0 %v704
    %715 = vmatprep.subr.mxu0 0.0
    %716 = vmatpush1.msra.mxu0 %v705
    %717 = vmatprep.subr.mxu0 0.0
    %718 = vmatpush1.msra.mxu0 0.0
    %719 = vmatprep.subr.mxu0 0.0
    %720 = vmatpush1.msra.mxu0 0.0
    %721 = vmatprep.subr.mxu0 0.0
    %722 = vmatpush1.msra.mxu0 0.0
    %723 = vmatprep.subr.mxu0 0.0
    %724 = vmatpush1.msra.mxu0 0.0
    %725 = vmatprep.subr.mxu0 0.0
    %726 = vmatpush1.msra.mxu0 0.0
    %727 = vmatprep.subr.mxu0 0.0
    %728 = vmatpush1.msra.mxu0 0.0
    %729 = vmatprep.subr.mxu0 0.0
    %730 = vmatpush1.msra.mxu0 0.0
    %731 = vmatprep.subr.mxu0 0.0
    %732 = vmatpush1.msra.mxu0 0.0
    %733 = vmatprep.subr.mxu0 0.0
    %734 = vmatpush1.msra.mxu0 0.0
    %735 = vmatprep.subr.mxu0 0.0
    %736 = vmatpush1.msra.mxu0 0.0
    %737 = vmatprep.subr.mxu0 0.0
    %738 = vmatpush1.msra.mxu0 0.0
    %739 = vmatprep.subr.mxu0 0.0
    %740 = vmatpush1.msra.mxu0 0.0
    %741 = vmatprep.subr.mxu0 0.0
    %742 = vmatpush1.msra.mxu0 0.0
    %743 = vmatprep.subr.mxu0 0.0
    %744 = vmatpush1.msra.mxu0 0.0
    %745 = vmatprep.subr.mxu0 0.0
    %746 = vmatpush1.msra.mxu0 0.0
    %747 = vmatprep.subr.mxu0 0.0
    %748 = vmatpush1.msra.mxu0 0.0
    %749 = vmatprep.subr.mxu0 0.0
    %750 = vmatpush1.msra.mxu0 0.0
    %751 = vmatprep.subr.mxu0 0.0
    %752 = vmatpush1.msra.mxu0 0.0
    %753 = vmatprep.subr.mxu0 0.0
    %754 = vmatpush1.msra.mxu0 0.0
    %755 = vmatprep.subr.mxu0 0.0
    %756 = vmatpush1.msra.mxu0 0.0
    %757 = vmatprep.subr.mxu0 0.0
    %758 = vmatpush1.msra.mxu0 0.0
    %759 = vmatprep.subr.mxu0 0.0
    %760 = vmatpush1.msra.mxu0 0.0
    %761 = vmatprep.subr.mxu0 0.0
    %762 = vmatpush1.msra.mxu0 0.0
    %763 = vmatprep.subr.mxu0 0.0
    %764 = vmatpush1.msra.mxu0 0.0
    %765 = vmatprep.subr.mxu0 0.0
    %766 = vmatpush1.msra.mxu0 0.0
    %767 = vmatprep.subr.mxu0 0.0
    %768 = vmatpush1.msra.mxu0 0.0
    %769 = vmatprep.subr.mxu0 0.0
    %770 = vmatpush1.msra.mxu0 0.0
    %771 = vmatprep.subr.mxu0 0.0
    %772 = vmatpush1.msra.mxu0 0.0
    %773 = vmatprep.mubr.f32.mxu0 0.0
    %774 = vmatmul.mubr.f32.gmra.mrb[0].mxu0 %v707
    %v775 = vpop.f32.mrb[0].mxu0
    %v776 = vadd.f32 0.0, %v775
    %v777 = vpop.f32.mrb[0].mxu0
    %778 = vdwg.mxu0
    %v779 = vadd.f32 %v700, %v776
    %v780 = vlaneseq
    %v781 = vshrl.u32 %v780, 7
    %v782 = vsub.s32 2, %v781
    %v783 = vrot.slane %v45, %v782
    %v784 = vadd.f32 %v779, %v783
    %vm785 = vcmp.gt.f32.partialorder %v784, 0.0
    %v786 = vmul.f32 %v784, 0.01
    %v787 = vsel %vm785, %v784, %v786
    %v788 = vld [vmem:[#allocation5 + $0xc0] sm:$0xff]
    %v789 = vld [vmem:[#allocation5 + $0xc8] sm:$0xff]
    %v790 = vld [vmem:[#allocation5 + $0xd0] sm:$0xff]
    %v791 = vld [vmem:[#allocation5 + $0xd8] sm:$0xff]
    %v792 = vlaneseq
    %v793 = vshrl.u32 %v792, 7
    %v794 = vsub.s32 3, %v793
    %v795 = vrot.slane %v45, %v794
    %v797 = vsel %vm136, %v787, 0
    %799 = vmatprep.subr.mxu0 0.0
    %800 = vmatpush1.msra.mxu0 %v788
    %801 = vmatprep.subr.mxu0 0.0
    %802 = vmatpush1.msra.mxu0 %v789
    %803 = vmatprep.subr.mxu0 0.0
    %804 = vmatpush1.msra.mxu0 %v790
    %805 = vmatprep.subr.mxu0 0.0
    %806 = vmatpush1.msra.mxu0 %v791
    %807 = vmatprep.subr.mxu0 0.0
    %808 = vmatpush1.msra.mxu0 0.0
    %809 = vmatprep.subr.mxu0 0.0
    %810 = vmatpush1.msra.mxu0 0.0
    %811 = vmatprep.subr.mxu0 0.0
    %812 = vmatpush1.msra.mxu0 0.0
    %813 = vmatprep.subr.mxu0 0.0
    %814 = vmatpush1.msra.mxu0 0.0
    %815 = vmatprep.subr.mxu0 0.0
    %816 = vmatpush1.msra.mxu0 0.0
    %817 = vmatprep.subr.mxu0 0.0
    %818 = vmatpush1.msra.mxu0 0.0
    %819 = vmatprep.subr.mxu0 0.0
    %820 = vmatpush1.msra.mxu0 0.0
    %821 = vmatprep.subr.mxu0 0.0
    %822 = vmatpush1.msra.mxu0 0.0
    %823 = vmatprep.subr.mxu0 0.0
    %824 = vmatpush1.msra.mxu0 0.0
    %825 = vmatprep.subr.mxu0 0.0
    %826 = vmatpush1.msra.mxu0 0.0
    %827 = vmatprep.subr.mxu0 0.0
    %828 = vmatpush1.msra.mxu0 0.0
    %829 = vmatprep.subr.mxu0 0.0
    %830 = vmatpush1.msra.mxu0 0.0
    %831 = vmatprep.subr.mxu0 0.0
    %832 = vmatpush1.msra.mxu0 0.0
    %833 = vmatprep.subr.mxu0 0.0
    %834 = vmatpush1.msra.mxu0 0.0
    %835 = vmatprep.subr.mxu0 0.0
    %836 = vmatpush1.msra.mxu0 0.0
    %837 = vmatprep.subr.mxu0 0.0
    %838 = vmatpush1.msra.mxu0 0.0
    %839 = vmatprep.subr.mxu0 0.0
    %840 = vmatpush1.msra.mxu0 0.0
    %841 = vmatprep.subr.mxu0 0.0
    %842 = vmatpush1.msra.mxu0 0.0
    %843 = vmatprep.subr.mxu0 0.0
    %844 = vmatpush1.msra.mxu0 0.0
    %845 = vmatprep.subr.mxu0 0.0
    %846 = vmatpush1.msra.mxu0 0.0
    %847 = vmatprep.subr.mxu0 0.0
    %848 = vmatpush1.msra.mxu0 0.0
    %849 = vmatprep.subr.mxu0 0.0
    %850 = vmatpush1.msra.mxu0 0.0
    %851 = vmatprep.subr.mxu0 0.0
    %852 = vmatpush1.msra.mxu0 0.0
    %853 = vmatprep.subr.mxu0 0.0
    %854 = vmatpush1.msra.mxu0 0.0
    %855 = vmatprep.subr.mxu0 0.0
    %856 = vmatpush1.msra.mxu0 0.0
    %857 = vmatprep.subr.mxu0 0.0
    %858 = vmatpush1.msra.mxu0 0.0
    %859 = vmatprep.subr.mxu0 0.0
    %860 = vmatpush1.msra.mxu0 0.0
    %861 = vmatprep.subr.mxu0 0.0
    %862 = vmatpush1.msra.mxu0 0.0
    %863 = vmatprep.mubr.f32.mxu0 0.0
    %864 = vmatmul.mubr.f32.gmra.mrb[0].mxu0 %v797
    %v865 = vpop.f32.mrb[0].mxu0
    %v866 = vadd.f32 %v795, %v865
    %v867 = vpop.f32.mrb[0].mxu0
    %868 = vdwg.mxu0
    %v869 = vld [vmem:[#allocation5 + $0xe0] sm:$0xff]
    %v870 = vld [vmem:[#allocation5 + $0xe8] sm:$0xff]
    %v871 = vld [vmem:[#allocation5 + $0xf0] sm:$0xff]
    %v872 = vld [vmem:[#allocation5 + $0xf8] sm:$0xff]
    %v873 = vlaneseq
    %v874 = vshrl.u32 %v873, 7
    %v875 = vsub.s32 4, %v874
    %v876 = vrot.slane %v45, %v875
    %v878 = vsel %vm136, %v866, 0
    %880 = vmatprep.subr.mxu0 0.0
    %881 = vmatpush1.msra.mxu0 %v869
    %882 = vmatprep.subr.mxu0 0.0
    %883 = vmatpush1.msra.mxu0 %v870
    %884 = vmatprep.subr.mxu0 0.0
    %885 = vmatpush1.msra.mxu0 %v871
    %886 = vmatprep.subr.mxu0 0.0
    %887 = vmatpush1.msra.mxu0 %v872
    %888 = vmatprep.subr.mxu0 0.0
    %889 = vmatpush1.msra.mxu0 0.0
    %890 = vmatprep.subr.mxu0 0.0
    %891 = vmatpush1.msra.mxu0 0.0
    %892 = vmatprep.subr.mxu0 0.0
    %893 = vmatpush1.msra.mxu0 0.0
    %894 = vmatprep.subr.mxu0 0.0
    %895 = vmatpush1.msra.mxu0 0.0
    %896 = vmatprep.subr.mxu0 0.0
    %897 = vmatpush1.msra.mxu0 0.0
    %898 = vmatprep.subr.mxu0 0.0
    %899 = vmatpush1.msra.mxu0 0.0
    %900 = vmatprep.subr.mxu0 0.0
    %901 = vmatpush1.msra.mxu0 0.0
    %902 = vmatprep.subr.mxu0 0.0
    %903 = vmatpush1.msra.mxu0 0.0
    %904 = vmatprep.subr.mxu0 0.0
    %905 = vmatpush1.msra.mxu0 0.0
    %906 = vmatprep.subr.mxu0 0.0
    %907 = vmatpush1.msra.mxu0 0.0
    %908 = vmatprep.subr.mxu0 0.0
    %909 = vmatpush1.msra.mxu0 0.0
    %910 = vmatprep.subr.mxu0 0.0
    %911 = vmatpush1.msra.mxu0 0.0
    %912 = vmatprep.subr.mxu0 0.0
    %913 = vmatpush1.msra.mxu0 0.0
    %914 = vmatprep.subr.mxu0 0.0
    %915 = vmatpush1.msra.mxu0 0.0
    %916 = vmatprep.subr.mxu0 0.0
    %917 = vmatpush1.msra.mxu0 0.0
    %918 = vmatprep.subr.mxu0 0.0
    %919 = vmatpush1.msra.mxu0 0.0
    %920 = vmatprep.subr.mxu0 0.0
    %921 = vmatpush1.msra.mxu0 0.0
    %922 = vmatprep.subr.mxu0 0.0
    %923 = vmatpush1.msra.mxu0 0.0
    %924 = vmatprep.subr.mxu0 0.0
    %925 = vmatpush1.msra.mxu0 0.0
    %926 = vmatprep.subr.mxu0 0.0
    %927 = vmatpush1.msra.mxu0 0.0
    %928 = vmatprep.subr.mxu0 0.0
    %929 = vmatpush1.msra.mxu0 0.0
    %930 = vmatprep.subr.mxu0 0.0
    %931 = vmatpush1.msra.mxu0 0.0
    %932 = vmatprep.subr.mxu0 0.0
    %933 = vmatpush1.msra.mxu0 0.0
    %934 = vmatprep.subr.mxu0 0.0
    %935 = vmatpush1.msra.mxu0 0.0
    %936 = vmatprep.subr.mxu0 0.0
    %937 = vmatpush1.msra.mxu0 0.0
    %938 = vmatprep.subr.mxu0 0.0
    %939 = vmatpush1.msra.mxu0 0.0
    %940 = vmatprep.subr.mxu0 0.0
    %941 = vmatpush1.msra.mxu0 0.0
    %942 = vmatprep.subr.mxu0 0.0
    %943 = vmatpush1.msra.mxu0 0.0
    %944 = vmatprep.mubr.f32.mxu0 0.0
    %945 = vmatmul.mubr.f32.gmra.mrb[0].mxu0 %v878
    %v946 = vpop.f32.mrb[0].mxu0
    %v947 = vadd.f32 %v876, %v946
    %v948 = vpop.f32.mrb[0].mxu0
    %949 = vdwg.mxu0
    %vm950 = vcmp.gt.f32.partialorder %v947, 0.0
    %v951 = vmul.f32 %v947, 0.01
    %v952 = vsel %vm950, %v947, %v951
    %v953 = vld [vmem:[#allocation5 + $0x100] sm:$0xff]
    %v954 = vld [vmem:[#allocation5 + $0x108] sm:$0xff]
    %v955 = vld [vmem:[#allocation5 + $0x110] sm:$0xff]
    %v956 = vld [vmem:[#allocation5 + $0x118] sm:$0xff]
    %v957 = vld [vmem:[#allocation5 + $0x120] sm:$0xff]
    %v958 = vld [vmem:[#allocation5 + $0x128] sm:$0xff]
    %v959 = vld [vmem:[#allocation5 + $0x130] sm:$0xff]
    %v960 = vld [vmem:[#allocation5 + $0x138] sm:$0xff]
    %v961 = vlaneseq
    %v962 = vshrl.u32 %v961, 7
    %v963 = vsub.s32 5, %v962
    %v964 = vrot.slane %v45, %v963
    %vm965 = vcmask 523264
    %v967 = vsel %vm965, %v952, 0
    %969 = vmatprep.subr.mxu0 0.0
    %970 = vmatpush1.msra.mxu0 %v953
    %971 = vmatprep.subr.mxu0 0.0
    %972 = vmatpush1.msra.mxu0 %v954
    %973 = vmatprep.subr.mxu0 0.0
    %974 = vmatpush1.msra.mxu0 %v955
    %975 = vmatprep.subr.mxu0 0.0
    %976 = vmatpush1.msra.mxu0 %v956
    %977 = vmatprep.subr.mxu0 0.0
    %978 = vmatpush1.msra.mxu0 %v957
    %979 = vmatprep.subr.mxu0 0.0
    %980 = vmatpush1.msra.mxu0 %v958
    %981 = vmatprep.subr.mxu0 0.0
    %982 = vmatpush1.msra.mxu0 %v959
    %983 = vmatprep.subr.mxu0 0.0
    %984 = vmatpush1.msra.mxu0 %v960
    %985 = vmatprep.subr.mxu0 0.0
    %986 = vmatpush1.msra.mxu0 0.0
    %987 = vmatprep.subr.mxu0 0.0
    %988 = vmatpush1.msra.mxu0 0.0
    %989 = vmatprep.subr.mxu0 0.0
    %990 = vmatpush1.msra.mxu0 0.0
    %991 = vmatprep.subr.mxu0 0.0
    %992 = vmatpush1.msra.mxu0 0.0
    %993 = vmatprep.subr.mxu0 0.0
    %994 = vmatpush1.msra.mxu0 0.0
    %995 = vmatprep.subr.mxu0 0.0
    %996 = vmatpush1.msra.mxu0 0.0
    %997 = vmatprep.subr.mxu0 0.0
    %998 = vmatpush1.msra.mxu0 0.0
    %999 = vmatprep.subr.mxu0 0.0
    %1000 = vmatpush1.msra.mxu0 0.0
    %1001 = vmatprep.subr.mxu0 0.0
    %1002 = vmatpush1.msra.mxu0 0.0
    %1003 = vmatprep.subr.mxu0 0.0
    %1004 = vmatpush1.msra.mxu0 0.0
    %1005 = vmatprep.subr.mxu0 0.0
    %1006 = vmatpush1.msra.mxu0 0.0
    %1007 = vmatprep.subr.mxu0 0.0
    %1008 = vmatpush1.msra.mxu0 0.0
    %1009 = vmatprep.subr.mxu0 0.0
    %1010 = vmatpush1.msra.mxu0 0.0
    %1011 = vmatprep.subr.mxu0 0.0
    %1012 = vmatpush1.msra.mxu0 0.0
    %1013 = vmatprep.subr.mxu0 0.0
    %1014 = vmatpush1.msra.mxu0 0.0
    %1015 = vmatprep.subr.mxu0 0.0
    %1016 = vmatpush1.msra.mxu0 0.0
    %1017 = vmatprep.subr.mxu0 0.0
    %1018 = vmatpush1.msra.mxu0 0.0
    %1019 = vmatprep.subr.mxu0 0.0
    %1020 = vmatpush1.msra.mxu0 0.0
    %1021 = vmatprep.subr.mxu0 0.0
    %1022 = vmatpush1.msra.mxu0 0.0
    %1023 = vmatprep.subr.mxu0 0.0
    %1024 = vmatpush1.msra.mxu0 0.0
    %1025 = vmatprep.subr.mxu0 0.0
    %1026 = vmatpush1.msra.mxu0 0.0
    %1027 = vmatprep.subr.mxu0 0.0
    %1028 = vmatpush1.msra.mxu0 0.0
    %1029 = vmatprep.subr.mxu0 0.0
    %1030 = vmatpush1.msra.mxu0 0.0
    %1031 = vmatprep.subr.mxu0 0.0
    %1032 = vmatpush1.msra.mxu0 0.0
    %1033 = vmatprep.mubr.f32.mxu0 0.0
    %1034 = vmatmul.mubr.f32.gmra.mrb[0].mxu0 %v967
    %v1035 = vpop.f32.mrb[0].mxu0
    %v1036 = vadd.f32 %v964, %v1035
    %v1037 = vpop.f32.mrb[0].mxu0
    %1038 = vdwg.mxu0
    %1039 = vst [vmem:[#allocation7] sm:$0x3] %v1036
    // Predicated region
    $region18: #{tpu_custom_call.1} parent=1 // pred_check
      _
    $region19: #{tpu_custom_call.1} parent=1 // pred_check_branch
      %1041 = sbr.rel (0) target = $region21
    $region20: #{tpu_custom_call.1} parent=1 // pred_region
      %s1043 = ssub.s32 32, 32
      %1044 = vsyncadd [#allocation4], %s1043
      %s1046 = sshll.u32 [#allocation7], 4
      %s1047 = int_to_ptr.vmem [resolvable:$true] %s1046
      %1049 = dma.vmem_to_hbm [thread:$0]  %s1047, 32, %s2, [#allocation4]
    $region21: #{tpu_custom_call.1} parent=1 // pred_fallthru
      _
    // Predicated region
    $region22: #{tpu_custom_call.1} parent=1 // pred_check
      _
    $region23: #{tpu_custom_call.1} parent=1 // pred_check_branch
      %1051 = sbr.rel (0) target = $region25
    $region24: #{tpu_custom_call.1} parent=1 // pred_region
      %1052 = dma.done [#allocation4], 32
    $region25: #{tpu_custom_call.1} parent=1 // pred_fallthru
      _
    %1053 = vsyncpa [#allocation3], 1
    %1054 = vsyncpa [#allocation6], 1
    %1055 = vsyncpa [#allocation4], 1

</llo_original>
